<compile_context>
chip_gen: v6e
topology: v6e:2x2x1
jax: 0.10.0
libtpu: 0.0.40
codegen_flags: <defaults>
</compile_context>

<pallas_src>
import jax
import jax.numpy as jnp
from jax.experimental import pallas as pl
from jax.experimental.pallas import tpu as pltpu


def adapter_kernel(x_ref, w1_ref, b1_ref, w2_ref, b2_ref, o_ref):
    # x_ref:  (tm, D)   current row tile
    # w1_ref: (D, H)    fc1 weight (transposed), H = D // 4
    # b1_ref: (1, H)    fc1 bias
    # w2_ref: (H, D)    fc2 weight (transposed)
    # b2_ref: (1, D)    fc2 bias
    # o_ref:  (tm, D)   output row tile
    x = x_ref[...]

    # fc1 (accumulate in f32 on the MXU) + bias
    h = jnp.dot(x, w1_ref[...], preferred_element_type=jnp.float32) + b1_ref[...]
    # QuickGELU: h * sigmoid(1.702 * h)  (sigmoid goes to the EUP slot)
    h = h * jax.nn.sigmoid(1.702 * h)
    # fc2: cast intermediate to the weight dtype (bf16 for fast MXU when bf16
    # weights are supplied; stays f32 in the f32 self-test), accumulate in f32.
    y = jnp.dot(h.astype(w2_ref.dtype), w2_ref[...],
                preferred_element_type=jnp.float32) + b2_ref[...]
    # residual add in f32, then cast to output dtype
    o_ref[...] = (y + x.astype(jnp.float32)).astype(o_ref.dtype)


def adapter_forward(x, w1_t, b1, w2_t, b2, *, tm=512):
    """x: (B, S, D). w1_t: (D, H), b1: (H,), w2_t: (H, D), b2: (D,).

    Production-shape tips: pass bf16 activations/weights on v6e/v7x; tm a
    multiple of 256 (default 512) keeps the MXU fed; H = D//4 should be a
    multiple of 128 for lane-dense intermediates (true for typical CLIP dims).
    """
    B, S, D = x.shape
    H = w1_t.shape[1]
    rows = B * S

    x2d = x.reshape(rows, D)
    b1_2d = b1.reshape(1, H)
    b2_2d = b2.reshape(1, D)

    # Row tile: as large as requested, but never larger than the (8-aligned)
    # row count. Pad rows to a multiple of tm; padded rows are discarded.
    tm = max(8, min(tm, ((rows + 7) // 8) * 8))
    padded_rows = pl.cdiv(rows, tm) * tm
    if padded_rows != rows:
        x2d = jnp.pad(x2d, ((0, padded_rows - rows), (0, 0)))

    # Explicit VMEM budget: resident weights/biases (double-buffered by the
    # pipeline, but tiny), double-buffered (tm, D) in/out row tiles, f32
    # intermediates, plus slack. Clamp to [32 MiB, 64 MiB] (valid on all gens).
    w_item = jnp.dtype(w1_t.dtype).itemsize
    x_item = jnp.dtype(x.dtype).itemsize
    weight_bytes = 2 * ((D * H + H * D) * w_item
                        + (H + D) * jnp.dtype(b1.dtype).itemsize)
    stream_bytes = 2 * 2 * tm * D * x_item          # in + out tiles, double-buffered
    interm_bytes = 4 * tm * (H + 2 * D)             # f32 intermediates / spill room
    need = weight_bytes + stream_bytes + interm_bytes + (4 << 20)
    vmem_limit = int(min(max(need, 32 << 20), 64 << 20))

    out2d = pl.pallas_call(
        adapter_kernel,
        out_shape=jax.ShapeDtypeStruct((padded_rows, D), x.dtype),
        grid_spec=pltpu.PrefetchScalarGridSpec(
            num_scalar_prefetch=0,
            grid=(padded_rows // tm,),
            in_specs=[
                # streamed row tile
                pl.BlockSpec((tm, D), lambda i: (i, 0)),
                # resident weights/biases (constant index_map -> fetched once)
                pl.BlockSpec((D, H), lambda i: (0, 0)),
                pl.BlockSpec((1, H), lambda i: (0, 0)),
                pl.BlockSpec((H, D), lambda i: (0, 0)),
                pl.BlockSpec((1, D), lambda i: (0, 0)),
            ],
            out_specs=pl.BlockSpec((tm, D), lambda i: (i, 0)),
        ),
        compiler_params=pltpu.CompilerParams(
            dimension_semantics=("parallel",),
            vmem_limit_bytes=vmem_limit,
        ),
    )(x2d, w1_t, b1_2d, w2_t, b2_2d)

    if padded_rows != rows:
        out2d = out2d[:rows]
    return out2d.reshape(B, S, D)


def reference_adapter(x, w1_t, b1, w2_t, b2):
    h = jnp.dot(x, w1_t) + b1
    h = h * jax.nn.sigmoid(1.702 * h)
    y = jnp.dot(h, w2_t) + b2
    return y + x


if __name__ == "__main__":
    # Small shapes: batch=2, seq=8, emb_dim=32 -> hidden = emb_dim // 4 = 8.
    B, S, D = 2, 8, 32
    H = D // 4

    key = jax.random.PRNGKey(0)
    kx, kw1, kb1, kw2, kb2 = jax.random.split(key, 5)

    x = jax.random.normal(kx, (B, S, D), dtype=jnp.float32)

    # PyTorch nn.Linear param shapes: fc1.weight (H, D), fc1.bias (H,),
    # fc2.weight (D, H), fc2.bias (D,). Deterministic synthetic init.
    fc1_w = jax.random.normal(kw1, (H, D), dtype=jnp.float32) * 0.1
    fc1_b = jax.random.normal(kb1, (H,), dtype=jnp.float32) * 0.1
    fc2_w = jax.random.normal(kw2, (D, H), dtype=jnp.float32) * 0.1
    fc2_b = jax.random.normal(kb2, (D,), dtype=jnp.float32) * 0.1

    # Pre-transpose to (in, out) for the kernel matmuls.
    w1_t = fc1_w.T  # (D, H)
    w2_t = fc2_w.T  # (H, D)

    out = adapter_forward(x, w1_t, fc1_b, w2_t, fc2_b)
    out = jax.block_until_ready(out)

    ref = reference_adapter(x, w1_t, fc1_b, w2_t, fc2_b)
    assert out.shape == (B, S, D)
    assert jnp.allclose(out, ref, atol=1e-5, rtol=1e-5), "mismatch vs reference"

    print("KERNEL_OK")
</pallas_src>

<mosaic_0001>
module attributes {stable_mosaic.version = 11 : i64} {
  func.func @adapter_kernel(%arg0: i32, %arg1: memref<16x32xf32, #tpu.memory_space<vmem>>, %arg2: memref<32x8xf32, #tpu.memory_space<vmem>>, %arg3: memref<1x8xf32, #tpu.memory_space<vmem>>, %arg4: memref<8x32xf32, #tpu.memory_space<vmem>>, %arg5: memref<1x32xf32, #tpu.memory_space<vmem>>, %arg6: memref<16x32xf32, #tpu.memory_space<vmem>>) attributes {dimension_semantics = [#tpu.dimension_semantics<parallel>], iteration_bounds = array<i64: 1>, scalar_prefetch = 0 : i64, scratch_operands = 0 : i64, tpu.core_type = #tpu.core_type<tc>, window_params = [{transform_indices = @transform_0, window_bounds = array<i64: 16, 32>}, {pipeline_mode = #tpu.pipeline_mode<synchronous>, transform_indices = @transform_1, window_bounds = array<i64: 32, 8>}, {pipeline_mode = #tpu.pipeline_mode<synchronous>, transform_indices = @transform_2, window_bounds = array<i64: 1, 8>}, {pipeline_mode = #tpu.pipeline_mode<synchronous>, transform_indices = @transform_3, window_bounds = array<i64: 8, 32>}, {pipeline_mode = #tpu.pipeline_mode<synchronous>, transform_indices = @transform_4, window_bounds = array<i64: 1, 32>}, {transform_indices = @transform_5, window_bounds = array<i64: 16, 32>}]} {
    %c0 = arith.constant 0 : index
    %c0_0 = arith.constant 0 : index
    %0 = vector.load %arg1[%c0, %c0_0] : memref<16x32xf32, #tpu.memory_space<vmem>>, vector<16x32xf32>
    %c0_1 = arith.constant 0 : index
    %c0_2 = arith.constant 0 : index
    %1 = vector.load %arg2[%c0_1, %c0_2] : memref<32x8xf32, #tpu.memory_space<vmem>>, vector<32x8xf32>
    %cst = arith.constant dense<0.000000e+00> : vector<16x8xf32>
    %2 = tpu.matmul %0, %1, %cst {dimension_numbers = #tpu.dot_dimension_numbers<[1], [0], [0], [1], [0, 0, 1, 1], [], []>} : vector<16x32xf32>, vector<32x8xf32>, vector<16x8xf32> -> vector<16x8xf32>
    %c0_3 = arith.constant 0 : index
    %c0_4 = arith.constant 0 : index
    %3 = vector.load %arg3[%c0_3, %c0_4] : memref<1x8xf32, #tpu.memory_space<vmem>>, vector<1x8xf32>
    %4 = vector.broadcast %3 : vector<1x8xf32> to vector<16x8xf32>
    %5 = arith.addf %2, %4 : vector<16x8xf32>
    %cst_5 = arith.constant 1.702000e+00 : f32
    %6 = vector.broadcast %cst_5 : f32 to vector<16x8xf32>
    %7 = arith.mulf %6, %5 : vector<16x8xf32>
    %8 = arith.negf %7 : vector<16x8xf32>
    %9 = math.exp %8 : vector<16x8xf32>
    %cst_6 = arith.constant 1.000000e+00 : f32
    %10 = vector.broadcast %cst_6 : f32 to vector<16x8xf32>
    %11 = arith.addf %10, %9 : vector<16x8xf32>
    %12 = arith.divf %10, %11 : vector<16x8xf32>
    %13 = arith.mulf %5, %12 : vector<16x8xf32>
    %c0_7 = arith.constant 0 : index
    %c0_8 = arith.constant 0 : index
    %14 = vector.load %arg4[%c0_7, %c0_8] : memref<8x32xf32, #tpu.memory_space<vmem>>, vector<8x32xf32>
    %cst_9 = arith.constant dense<0.000000e+00> : vector<16x32xf32>
    %15 = tpu.matmul %13, %14, %cst_9 {dimension_numbers = #tpu.dot_dimension_numbers<[1], [0], [0], [1], [0, 0, 1, 1], [], []>} : vector<16x8xf32>, vector<8x32xf32>, vector<16x32xf32> -> vector<16x32xf32>
    %c0_10 = arith.constant 0 : index
    %c0_11 = arith.constant 0 : index
    %16 = vector.load %arg5[%c0_10, %c0_11] : memref<1x32xf32, #tpu.memory_space<vmem>>, vector<1x32xf32>
    %17 = vector.broadcast %16 : vector<1x32xf32> to vector<16x32xf32>
    %18 = arith.addf %15, %17 : vector<16x32xf32>
    %19 = arith.addf %18, %0 : vector<16x32xf32>
    %c0_12 = arith.constant 0 : index
    %c0_13 = arith.constant 0 : index
    %20 = vector.load %arg6[%c0_12, %c0_13] : memref<16x32xf32, #tpu.memory_space<vmem>>, vector<16x32xf32>
    tpu.vector_store %arg6[%c0_12, %c0_13], %19 {strides = array<i32>} : memref<16x32xf32, #tpu.memory_space<vmem>>, vector<16x32xf32>,
    return
  }
  func.func @transform_0(%arg0: i32) -> (i32, i32) {
    %c0_i32 = arith.constant 0 : i32
    %c0_i32_0 = arith.constant 0 : i32
    return %arg0, %c0_i32 : i32, i32
  }
  func.func @transform_1(%arg0: i32) -> (i32, i32) {
    %c0_i32 = arith.constant 0 : i32
    %c0_i32_0 = arith.constant 0 : i32
    %c0_i32_1 = arith.constant 0 : i32
    return %c0_i32, %c0_i32_0 : i32, i32
  }
  func.func @transform_2(%arg0: i32) -> (i32, i32) {
    %c0_i32 = arith.constant 0 : i32
    %c0_i32_0 = arith.constant 0 : i32
    %c0_i32_1 = arith.constant 0 : i32
    return %c0_i32, %c0_i32_0 : i32, i32
  }
  func.func @transform_3(%arg0: i32) -> (i32, i32) {
    %c0_i32 = arith.constant 0 : i32
    %c0_i32_0 = arith.constant 0 : i32
    %c0_i32_1 = arith.constant 0 : i32
    return %c0_i32, %c0_i32_0 : i32, i32
  }
  func.func @transform_4(%arg0: i32) -> (i32, i32) {
    %c0_i32 = arith.constant 0 : i32
    %c0_i32_0 = arith.constant 0 : i32
    %c0_i32_1 = arith.constant 0 : i32
    return %c0_i32, %c0_i32_0 : i32, i32
  }
  func.func @transform_5(%arg0: i32) -> (i32, i32) {
    %c0_i32 = arith.constant 0 : i32
    %c0_i32_0 = arith.constant 0 : i32
    return %arg0, %c0_i32 : i32, i32
  }
}

</mosaic_0001>

<llo_original>
// kernel: tpu_custom_call.1
$region0: #{tpu_custom_call.1}
  #allocation0 [shape = 'u32[]', space=smem, size = 0x4, offset = 0x4, fixed_abs, tag = 'smem constant byte address 0x4 - core index']
  #allocation1 [shape = 'u32[144,128]{1,0:T(1,128)}', space=vmem, size = 0x12000, scoped, tag = 'internal scratch']
  %s0 = inlined_call_operand.vmem [shape: f32[16,32], index: 0, kind: input, shape index: {}]
  %s1 = inlined_call_operand.vmem [shape: f32[32,8], index: 1, kind: input, shape index: {}]
  %s2 = inlined_call_operand.vmem [shape: f32[1,8], index: 2, kind: input, shape index: {}]
  %s3 = inlined_call_operand.vmem [shape: f32[8,32], index: 3, kind: input, shape index: {}]
  %s4 = inlined_call_operand.vmem [shape: f32[1,32], index: 4, kind: input, shape index: {}]
  %s5 = inlined_call_operand.hbm [shape: f32[16,32], index: 5, kind: output, shape index: {}]
  %s6 = sld [smem:[#allocation0]]
  $region30: #{tpu_custom_call.1} parent=0
    _
  %s8 = ssub.s32 1, %s6
  %s9 = scalar_select 0, %s8, %s6
  $region1: #{tpu_custom_call.1} parent=0
    #allocation2 [shape = 'u8[8192]{0}', space=vmem, size = 0x2000, scoped, tag = 'output window, operand 0, single buffered']
    #allocation3 [shape = 's32[1]{0}', space=sflag, size = 0x4, scoped, tag = 'scoped memory for tpu_custom_call.1']
    %10 = vsyncpa [#allocation3], 0
    // Predicated region
    $region2: #{tpu_custom_call.1} parent=1 // pred_check
      _
    $region3: #{tpu_custom_call.1} parent=1 // pred_check_branch
      %12 = sbr.rel (0) target = $region5
    $region4: #{tpu_custom_call.1} parent=1 // pred_region
      _
    $region5: #{tpu_custom_call.1} parent=1 // pred_fallthru
      _
    // Predicated region
    $region6: #{tpu_custom_call.1} parent=1 // pred_check
      _
    $region7: #{tpu_custom_call.1} parent=1 // pred_check_branch
      %14 = sbr.rel (0) target = $region9
    $region8: #{tpu_custom_call.1} parent=1 // pred_region
      _
    $region9: #{tpu_custom_call.1} parent=1 // pred_fallthru
      _
    // Predicated region
    $region10: #{tpu_custom_call.1} parent=1 // pred_check
      _
    $region11: #{tpu_custom_call.1} parent=1 // pred_check_branch
      %16 = sbr.rel (0) target = $region13
    $region12: #{tpu_custom_call.1} parent=1 // pred_region
      _
    $region13: #{tpu_custom_call.1} parent=1 // pred_fallthru
      _
    // Predicated region
    $region14: #{tpu_custom_call.1} parent=1 // pred_check
      _
    $region15: #{tpu_custom_call.1} parent=1 // pred_check_branch
      %18 = sbr.rel (0) target = $region17
    $region16: #{tpu_custom_call.1} parent=1 // pred_region
      _
    $region17: #{tpu_custom_call.1} parent=1 // pred_fallthru
      _
    // Predicated region
    $region18: #{tpu_custom_call.1} parent=1 // pred_check
      _
    $region19: #{tpu_custom_call.1} parent=1 // pred_check_branch
      %20 = sbr.rel (0) target = $region21
    $region20: #{tpu_custom_call.1} parent=1 // pred_region
      _
    $region21: #{tpu_custom_call.1} parent=1 // pred_fallthru
      _
    %v21 = vld [vmem:[%s0] sm:$0xff]
    %v22 = vld [vmem:[%s0 + $0x8] sm:$0xff]
    %v23 = vld [vmem:[%s1] sm:$0xff]
    %v24 = vld [vmem:[%s1 + $0x8] sm:$0xff]
    %v25 = vld [vmem:[%s1 + $0x10] sm:$0xff]
    %v26 = vld [vmem:[%s1 + $0x18] sm:$0xff]
    %v27 = vld [vmem:[%s2] sm:$0x1]
    %v29 = vlaneseq
    %v30 = vshrl.u32 %v29, 7
    %v31 = vsub.s32 0, %v30
    %v32 = vrot.slane %v27, %v31
    %vm34 = vcmask 261120
    %v36 = vsel %vm34, %v21, 0
    %v39 = vsel %vm34, %v22, 0
    %41 = vmatprep.subr.mxu0 0.0
    %42 = vmatpush1.msra.mxu0 0.0
    %43 = vmatprep.subr.mxu0 0.0
    %44 = vmatpush1.msra.mxu0 0.0
    %45 = vmatprep.subr.mxu0 0.0
    %46 = vmatpush1.msra.mxu0 0.0
    %47 = vmatprep.subr.mxu0 0.0
    %48 = vmatpush1.msra.mxu0 0.0
    %49 = vmatprep.subr.mxu0 0.0
    %50 = vmatpush1.msra.mxu0 0.0
    %51 = vmatprep.subr.mxu0 0.0
    %52 = vmatpush1.msra.mxu0 0.0
    %53 = vmatprep.subr.mxu0 0.0
    %54 = vmatpush1.msra.mxu0 0.0
    %55 = vmatprep.subr.mxu0 0.0
    %56 = vmatpush1.msra.mxu0 0.0
    %57 = vmatprep.subr.mxu0 0.0
    %58 = vmatpush1.msra.mxu0 0.0
    %59 = vmatprep.subr.mxu0 0.0
    %60 = vmatpush1.msra.mxu0 0.0
    %61 = vmatprep.subr.mxu0 0.0
    %62 = vmatpush1.msra.mxu0 0.0
    %63 = vmatprep.subr.mxu0 0.0
    %64 = vmatpush1.msra.mxu0 0.0
    %65 = vmatprep.subr.mxu0 0.0
    %66 = vmatpush1.msra.mxu0 %v26
    %67 = vmatprep.subr.mxu0 0.0
    %68 = vmatpush1.msra.mxu0 %v25
    %69 = vmatprep.subr.mxu0 0.0
    %70 = vmatpush1.msra.mxu0 %v24
    %71 = vmatprep.subr.mxu0 0.0
    %72 = vmatpush1.msra.mxu0 %v23
    %73 = vmatprep.subr.mxu0 0.0
    %74 = vmatpush2.msra.mxu0 0.0
    %75 = vmatprep.subr.mxu0 0.0
    %76 = vmatpush2.msra.mxu0 0.0
    %77 = vmatprep.subr.mxu0 0.0
    %78 = vmatpush2.msra.mxu0 0.0
    %79 = vmatprep.subr.mxu0 0.0
    %80 = vmatpush2.msra.mxu0 0.0
    %81 = vmatprep.subr.mxu0 0.0
    %82 = vmatpush2.msra.mxu0 0.0
    %83 = vmatprep.subr.mxu0 0.0
    %84 = vmatpush2.msra.mxu0 0.0
    %85 = vmatprep.subr.mxu0 0.0
    %86 = vmatpush2.msra.mxu0 0.0
    %87 = vmatprep.subr.mxu0 0.0
    %88 = vmatpush2.msra.mxu0 0.0
    %89 = vmatprep.subr.mxu0 0.0
    %90 = vmatpush2.msra.mxu0 0.0
    %91 = vmatprep.subr.mxu0 0.0
    %92 = vmatpush2.msra.mxu0 0.0
    %93 = vmatprep.subr.mxu0 0.0
    %94 = vmatpush2.msra.mxu0 0.0
    %95 = vmatprep.subr.mxu0 0.0
    %96 = vmatpush2.msra.mxu0 0.0
    %97 = vmatprep.subr.mxu0 0.0
    %98 = vmatpush2.msra.mxu0 0.0
    %99 = vmatprep.subr.mxu0 0.0
    %100 = vmatpush2.msra.mxu0 0.0
    %101 = vmatprep.subr.mxu0 0.0
    %102 = vmatpush2.msra.mxu0 0.0
    %103 = vmatprep.subr.mxu0 0.0
    %104 = vmatpush2.msra.mxu0 0.0
    %105 = vmatprep.mubr.f32.mxu0 0.0
    %106 = vmatmul.mubr.f32.gmra.mxu0 %v36
    %v107 = vpop.f32.mrf.mxu0
    %v108 = vadd.f32 %v32, %v107
    %v109 = vpop.f32.mrf.mxu0
    %110 = vmatprep.mubr.f32.mxu0 0.0
    %111 = vmatmul.mubr.f32.gmra.mxu0 %v39
    %v112 = vpop.f32.mrf.mxu0
    %v113 = vadd.f32 %v32, %v112
    %v114 = vpop.f32.mrf.mxu0
    %115 = vdwg.mxu0
    %v116 = vmul.f32 %v108, 1.702
    %v117 = vmul.f32 %v113, 1.702
    %v118 = vxor.u32 %v116, 2147483648
    %v119 = vxor.u32 %v117, 2147483648
    %v120 = vmul.f32 %v118, 1.442695
    %v121 = vpow.pop %v120
    %v122 = vmul.f32 %v119, 1.442695
    %v123 = vpow.pop %v122
    %v124 = vadd.f32 %v121, 1.0
    %v125 = vadd.f32 %v123, 1.0
    %v126 = vrcp.pop %v124
    %v127 = vmul.f32 1.0, %v126
    %v128 = vrcp.pop %v125
    %v129 = vmul.f32 1.0, %v128
    %v130 = vmul.f32 %v108, %v127
    %v131 = vmul.f32 %v113, %v129
    %v132 = vld [vmem:[%s3] sm:$0xff]
    %v133 = vld [vmem:[%s4] sm:$0x1]
    %v135 = vlaneseq
    %v136 = vshrl.u32 %v135, 7
    %v137 = vsub.s32 0, %v136
    %v138 = vrot.slane %v133, %v137
    %vm140 = vcmask 64512
    %v142 = vsel %vm140, %v130, 0
    %v145 = vsel %vm140, %v131, 0
    %147 = vmatprep.subr.mxu0 0.0
    %148 = vmatpush1.msra.mxu0 0.0
    %149 = vmatprep.subr.mxu0 0.0
    %150 = vmatpush1.msra.mxu0 0.0
    %151 = vmatprep.subr.mxu0 0.0
    %152 = vmatpush1.msra.mxu0 0.0
    %153 = vmatprep.subr.mxu0 0.0
    %154 = vmatpush1.msra.mxu0 0.0
    %155 = vmatprep.subr.mxu0 0.0
    %156 = vmatpush1.msra.mxu0 0.0
    %157 = vmatprep.subr.mxu0 0.0
    %158 = vmatpush1.msra.mxu0 0.0
    %159 = vmatprep.subr.mxu0 0.0
    %160 = vmatpush1.msra.mxu0 0.0
    %161 = vmatprep.subr.mxu0 0.0
    %162 = vmatpush1.msra.mxu0 0.0
    %163 = vmatprep.subr.mxu0 0.0
    %164 = vmatpush1.msra.mxu0 0.0
    %165 = vmatprep.subr.mxu0 0.0
    %166 = vmatpush1.msra.mxu0 0.0
    %167 = vmatprep.subr.mxu0 0.0
    %168 = vmatpush1.msra.mxu0 0.0
    %169 = vmatprep.subr.mxu0 0.0
    %170 = vmatpush1.msra.mxu0 0.0
    %171 = vmatprep.subr.mxu0 0.0
    %172 = vmatpush1.msra.mxu0 0.0
    %173 = vmatprep.subr.mxu0 0.0
    %174 = vmatpush1.msra.mxu0 0.0
    %175 = vmatprep.subr.mxu0 0.0
    %176 = vmatpush1.msra.mxu0 0.0
    %177 = vmatprep.subr.mxu0 0.0
    %178 = vmatpush1.msra.mxu0 %v132
    %179 = vmatprep.subr.mxu0 0.0
    %180 = vmatpush2.msra.mxu0 0.0
    %181 = vmatprep.subr.mxu0 0.0
    %182 = vmatpush2.msra.mxu0 0.0
    %183 = vmatprep.subr.mxu0 0.0
    %184 = vmatpush2.msra.mxu0 0.0
    %185 = vmatprep.subr.mxu0 0.0
    %186 = vmatpush2.msra.mxu0 0.0
    %187 = vmatprep.subr.mxu0 0.0
    %188 = vmatpush2.msra.mxu0 0.0
    %189 = vmatprep.subr.mxu0 0.0
    %190 = vmatpush2.msra.mxu0 0.0
    %191 = vmatprep.subr.mxu0 0.0
    %192 = vmatpush2.msra.mxu0 0.0
    %193 = vmatprep.subr.mxu0 0.0
    %194 = vmatpush2.msra.mxu0 0.0
    %195 = vmatprep.subr.mxu0 0.0
    %196 = vmatpush2.msra.mxu0 0.0
    %197 = vmatprep.subr.mxu0 0.0
    %198 = vmatpush2.msra.mxu0 0.0
    %199 = vmatprep.subr.mxu0 0.0
    %200 = vmatpush2.msra.mxu0 0.0
    %201 = vmatprep.subr.mxu0 0.0
    %202 = vmatpush2.msra.mxu0 0.0
    %203 = vmatprep.subr.mxu0 0.0
    %204 = vmatpush2.msra.mxu0 0.0
    %205 = vmatprep.subr.mxu0 0.0
    %206 = vmatpush2.msra.mxu0 0.0
    %207 = vmatprep.subr.mxu0 0.0
    %208 = vmatpush2.msra.mxu0 0.0
    %209 = vmatprep.subr.mxu0 0.0
    %210 = vmatpush2.msra.mxu0 0.0
    %211 = vmatprep.mubr.f32.mxu0 0.0
    %212 = vmatmul.mubr.f32.gmra.mxu0 %v142
    %v213 = vpop.f32.mrf.mxu0
    %v214 = vadd.f32 %v138, %v213
    %v215 = vpop.f32.mrf.mxu0
    %216 = vmatprep.mubr.f32.mxu0 0.0
    %217 = vmatmul.mubr.f32.gmra.mxu0 %v145
    %v218 = vpop.f32.mrf.mxu0
    %v219 = vadd.f32 %v138, %v218
    %v220 = vpop.f32.mrf.mxu0
    %221 = vdwg.mxu0
    %v222 = vadd.f32 %v214, %v21
    %v223 = vadd.f32 %v219, %v22
    %224 = vst.msk [vmem:[#allocation2] sm:$0xff] %vm34, %v222
    %225 = vst.msk [vmem:[#allocation2 + $0x8] sm:$0xff] %vm34, %v223
    // Predicated region
    $region22: #{tpu_custom_call.1} parent=1 // pred_check
      _
    $region23: #{tpu_custom_call.1} parent=1 // pred_check_branch
      %227 = sbr.rel (0) target = $region25
    $region24: #{tpu_custom_call.1} parent=1 // pred_region
      %s229 = ssub.s32 256, 256
      %230 = vsyncadd [#allocation3], %s229
      %s231 = sshll.u32 [#allocation2], 4
      %s232 = int_to_ptr.vmem [resolvable:$true] %s231
      %237 = dma.vmem_to_hbm [thread:$0]  %s232, 256, %s5, [#allocation3], 128, 128, 8
    $region25: #{tpu_custom_call.1} parent=1 // pred_fallthru
      _
    // Predicated region
    $region26: #{tpu_custom_call.1} parent=1 // pred_check
      _
    $region27: #{tpu_custom_call.1} parent=1 // pred_check_branch
      %239 = sbr.rel (0) target = $region29
    $region28: #{tpu_custom_call.1} parent=1 // pred_region
      %240 = dma.done [#allocation3], 256
    $region29: #{tpu_custom_call.1} parent=1 // pred_fallthru
      _
    %241 = vsyncpa [#allocation3], 1

</llo_original>
